<compile_context>
chip_gen: v5e
topology: v5e:2x2
jax: 0.10.0
libtpu: 0.0.40
codegen_flags: <defaults>
</compile_context>

<pallas_src>
import jax
import jax.numpy as jnp
from jax.experimental import pallas as pl
from jax.experimental.pallas import tpu as pltpu


# ----------------------------------------------------------------------------
# kernel
# ----------------------------------------------------------------------------
def _make_ce_kernel(c_total, tile_c, num_c_tiles, needs_col_mask):
    def kernel(logits_ref, labels_ref, loss_ref, cnt_ref, m_ref, s_ref, t_ref):
        j = pl.program_id(1)  # C-tile index (reduction axis, last / "arbitrary")

        @pl.when(j == 0)
        def _init():
            m_ref[...] = jnp.full_like(m_ref, -jnp.inf)
            s_ref[...] = jnp.zeros_like(s_ref)
            t_ref[...] = jnp.zeros_like(t_ref)

        raw = logits_ref[...]            # (tile_n, tile_c) native dtype (bf16 ok)
        labels = labels_ref[...]         # (tile_n, 1) int32
        tn, tc = raw.shape

        col_local = jax.lax.broadcasted_iota(jnp.int32, (tn, tc), 1)

        # --- target-logit gather on the RAW dtype (bf16 compare/select = half
        #     the vregs on v6e/v7x); exactly one non-zero per row across all C
        #     tiles, so the narrow-dtype row sum is exact.
        local_lab = labels - j * tile_c                    # (tile_n, 1)
        tgt = jnp.sum(jnp.where(col_local == local_lab, raw, 0),
                      axis=-1, keepdims=True)
        t_ref[...] += tgt.astype(jnp.float32)

        # --- online log-sum-exp over C tiles (f32 inside the kernel)
        x = raw.astype(jnp.float32)
        if needs_col_mask:
            # trace-time flag: only emitted when C % tile_c != 0; neutralizes
            # the garbage lanes of the ragged last C block.
            x = jnp.where(j * tile_c + col_local < c_total, x, -jnp.inf)

        m_prev = m_ref[...]
        m_new = jnp.maximum(m_prev, jnp.max(x, axis=-1, keepdims=True))
        alpha = jnp.exp(m_prev - m_new)                     # exp(-inf)=0 at j==0
        s_ref[...] = alpha * s_ref[...] + jnp.sum(jnp.exp(x - m_new),
                                                  axis=-1, keepdims=True)
        m_ref[...] = m_new

        @pl.when(j == num_c_tiles - 1)
        def _finalize():
            lse = m_ref[...] + jnp.log(s_ref[...])
            # ignore_index=-100 (and padded/garbage rows).  labels >= C are
            # also excluded (torch would raise; no device-side assert here).
            valid = jnp.logical_and(labels >= 0, labels < c_total)
            loss_ref[...] = jnp.where(valid, lse - t_ref[...], 0.0)
            cnt_ref[...] = valid.astype(jnp.float32)

    return kernel


# ----------------------------------------------------------------------------
# tiling / VMEM budgeting
# ----------------------------------------------------------------------------
def _round_up(x, m):
    return -(-x // m) * m


def _vmem_budget():
    """(vmem_limit_bytes, working-set budget) derived from this chip's VMEM."""
    phys = 64 * 1024 * 1024                      # conservative: v7x per-TC VMEM
    try:
        info = pltpu.get_tpu_info()
        phys = int(getattr(info, "vmem_capacity_bytes", phys) or phys)
    except Exception:
        pass
    # v5e/v6e (128 MiB) -> limit 96 MiB, budget 64 MiB; v7x (64 MiB) -> 48 / 32.
    limit = max(32 * 1024 * 1024, min(96 * 1024 * 1024, phys * 3 // 4))
    return limit, limit * 2 // 3


def _select_tiles(n, c, dtype_bytes, work_budget,
                  tile_c_cap=8192, tile_n_cap=8192):
    # C tile: full C when it fits, otherwise a multiple of 128; prefer one that
    # divides C so the ragged-column mask can be dropped at trace time.
    if c <= tile_c_cap:
        tile_c = c
    else:
        tile_c = tile_c_cap
        cand = tile_c_cap
        while cand >= tile_c_cap // 2:
            if c % cand == 0:
                tile_c = cand
                break
            cand -= 128

    # N tile sized by bytes: double-buffered native input tile plus ~4
    # full-size f32 intermediates (cast / iota / select / exp).
    per_row = 2 * tile_c * dtype_bytes + 4 * tile_c * 4
    tile_n = max(8, min(tile_n_cap, (work_budget // per_row) // 8 * 8))
    tile_n = min(tile_n, _round_up(n, 8))

    # guarantee >= 2 grid steps on the parallel batch axis (v7x: 2 TensorCores)
    if n > 8 and pl.cdiv(n, tile_n) < 2:
        tile_n = max(8, _round_up(-(-n // 2), 8))
    return tile_n, tile_c


# ----------------------------------------------------------------------------
# wrapper
# ----------------------------------------------------------------------------
def classification_loss_pallas(ue, labels, tile_n=None, tile_c=None):
    """Mean cross-entropy over rows of `ue` with integer `labels` (Pallas)."""
    n, c = ue.shape
    dtype_bytes = jnp.dtype(ue.dtype).itemsize
    vmem_limit, work_budget = _vmem_budget()

    auto_tn, auto_tc = _select_tiles(n, c, dtype_bytes, work_budget)
    if tile_n is None:
        tile_n = auto_tn
    if tile_c is None:
        tile_c = auto_tc
    tile_n = max(8, (tile_n // 8) * 8)
    assert tile_c == c or tile_c % 128 == 0, \
        "tile_c must equal C or be a multiple of 128"

    num_n = pl.cdiv(n, tile_n)
    num_c = pl.cdiv(c, tile_c)
    n_pad = num_n * tile_n
    needs_col_mask = (c % tile_c) != 0

    # Only the tiny labels vector is padded; the (N, C) logits stay untouched
    # in HBM (no pad copy).  Padded / garbage rows get label -100 -> masked.
    labels_i32 = labels.astype(jnp.int32)
    if n_pad != n:
        labels_i32 = jnp.pad(labels_i32, (0, n_pad - n), constant_values=-100)
    labels_2d = labels_i32.reshape(n_pad, 1)

    kernel = _make_ce_kernel(c, tile_c, num_c, needs_col_mask)

    loss_rows, cnt_rows = pl.pallas_call(
        kernel,
        out_shape=(jax.ShapeDtypeStruct((n_pad, 1), jnp.float32),
                   jax.ShapeDtypeStruct((n_pad, 1), jnp.float32)),
        grid_spec=pltpu.PrefetchScalarGridSpec(
            num_scalar_prefetch=0,
            grid=(num_n, num_c),
            in_specs=[
                # logits in native dtype (bf16 stays bf16 in HBM/DMA)
                pl.BlockSpec((tile_n, tile_c), lambda i, j: (i, j)),
                # labels fetched once per row tile (index constant over j)
                pl.BlockSpec((tile_n, 1), lambda i, j: (i, 0)),
            ],
            out_specs=[
                pl.BlockSpec((tile_n, 1), lambda i, j: (i, 0)),
                pl.BlockSpec((tile_n, 1), lambda i, j: (i, 0)),
            ],
            scratch_shapes=[pltpu.VMEM((tile_n, 1), jnp.float32)] * 3),
        compiler_params=pltpu.CompilerParams(
            dimension_semantics=("parallel", "arbitrary"),
            vmem_limit_bytes=vmem_limit),
        cost_estimate=pl.CostEstimate(
            flops=int(6 * n * c),
            transcendentals=int(n * c),
            bytes_accessed=int(n * c * dtype_bytes + n_pad * 4 + 2 * n_pad * 4)),
    )(ue, labels_2d)

    total = jnp.sum(loss_rows)
    count = jnp.sum(cnt_rows)
    # Matches torch: if every row is ignored (count == 0) this yields NaN (0/0).
    return total / count


def classification_loss(ue, labels, use_pallas=None):
    """Dispatcher: tiny problems stay in fused XLA, larger ones use the kernel."""
    n, c = ue.shape
    if use_pallas is None:
        use_pallas = n * c >= (1 << 16)   # below this the kernel is launch overhead
    if not use_pallas:
        logp = jax.nn.log_softmax(ue.astype(jnp.float32), axis=-1)
        valid = jnp.logical_and(labels >= 0, labels < c)
        safe = jnp.where(valid, labels, 0).astype(jnp.int32)
        nll = -jnp.take_along_axis(logp, safe[:, None], axis=-1)[:, 0]
        nll = jnp.where(valid, nll, 0.0)
        return jnp.sum(nll) / jnp.sum(valid.astype(jnp.float32))
    return classification_loss_pallas(ue, labels)


# ----------------------------------------------------------------------------
# demo / self-check
# ----------------------------------------------------------------------------
if __name__ == "__main__":
    key = jax.random.PRNGKey(0)
    k_logits, k_labels = jax.random.split(key)

    # small demo: 60 embeddings x 320 classes, bf16 logits.
    #   * N=60 is not a multiple of the row tile -> exercises the un-padded
    #     ragged last row block (garbage rows masked via padded labels).
    #   * second run forces tile_c=128 with C=320 -> exercises the online-LSE
    #     C-tiling path including the ragged (column-masked) last C block.
    N, C = 60, 320
    ue = jax.random.normal(k_logits, (N, C), dtype=jnp.float32).astype(jnp.bfloat16)
    labels = jax.random.randint(k_labels, (N,), 0, C, dtype=jnp.int32)
    labels = labels.at[5].set(-100)          # exercise ignore_index=-100 semantics

    # pure-JAX reference of F.cross_entropy (mean reduction, ignore_index=-100)
    logits_f32 = ue.astype(jnp.float32)
    logp = jax.nn.log_softmax(logits_f32, axis=-1)
    valid = labels >= 0
    safe = jnp.where(valid, labels, 0)
    nll = -jnp.take_along_axis(logp, safe[:, None], axis=-1)[:, 0]
    ref = jnp.sum(jnp.where(valid, nll, 0.0)) / jnp.sum(valid.astype(jnp.float32))

    # auto-tiled path (single C tile, >=2 row tiles)
    loss = classification_loss_pallas(ue, labels)
    jax.block_until_ready(loss)
    assert jnp.allclose(loss, ref, atol=1e-4, rtol=1e-4), (loss, ref)

    # forced C-tiled online-LSE path with a ragged last C block
    loss_ct = classification_loss_pallas(ue, labels, tile_n=16, tile_c=128)
    jax.block_until_ready(loss_ct)
    assert jnp.allclose(loss_ct, ref, atol=1e-4, rtol=1e-4), (loss_ct, ref)

    # small-shape XLA fallback of the dispatcher
    small = classification_loss(logits_f32[:8, :32], labels[:8] % 32)
    jax.block_until_ready(small)

    print("KERNEL_OK")
</pallas_src>

<mosaic_0001>
module attributes {stable_mosaic.version = 11 : i64} {
  func.func @kernel(%arg0: i32, %arg1: i32, %arg2: memref<32x320xbf16, #tpu.memory_space<vmem>>, %arg3: memref<32x1xi32, #tpu.memory_space<vmem>>, %arg4: memref<32x1xf32, #tpu.memory_space<vmem>>, %arg5: memref<32x1xf32, #tpu.memory_space<vmem>>, %arg6: memref<32x1xf32, #tpu.memory_space<vmem>>, %arg7: memref<32x1xf32, #tpu.memory_space<vmem>>, %arg8: memref<32x1xf32, #tpu.memory_space<vmem>>) attributes {dimension_semantics = [#tpu.dimension_semantics<parallel>, #tpu.dimension_semantics<arbitrary>], iteration_bounds = array<i64: 2, 1>, scalar_prefetch = 0 : i64, scratch_operands = 3 : i64, tpu.core_type = #tpu.core_type<tc>, window_params = [{transform_indices = @transform_0, window_bounds = array<i64: 32, 320>}, {transform_indices = @transform_1, window_bounds = array<i64: 32, 1>}, {transform_indices = @transform_2, window_bounds = array<i64: 32, 1>}, {transform_indices = @transform_3, window_bounds = array<i64: 32, 1>}]} {
    %c0_i32 = arith.constant 0 : i32
    %0 = arith.cmpi eq, %arg1, %c0_i32 : i32
    %1 = arith.extui %0 : i1 to i32
    %c0_i32_0 = arith.constant 0 : i32
    %2 = arith.cmpi ne, %1, %c0_i32_0 : i32
    scf.if %2 {
      %cst_21 = arith.constant 0xFF800000 : f32
      %42 = vector.broadcast %cst_21 : f32 to vector<32x1xf32>
      %c0_22 = arith.constant 0 : index
      %c0_23 = arith.constant 0 : index
      %43 = vector.load %arg6[%c0_22, %c0_23] : memref<32x1xf32, #tpu.memory_space<vmem>>, vector<32x1xf32>
      tpu.vector_store %arg6[%c0_22, %c0_23], %42 {strides = array<i32>} : memref<32x1xf32, #tpu.memory_space<vmem>>, vector<32x1xf32>,
      %cst_24 = arith.constant 0.000000e+00 : f32
      %44 = vector.broadcast %cst_24 : f32 to vector<32x1xf32>
      %c0_25 = arith.constant 0 : index
      %c0_26 = arith.constant 0 : index
      %45 = vector.load %arg7[%c0_25, %c0_26] : memref<32x1xf32, #tpu.memory_space<vmem>>, vector<32x1xf32>
      tpu.vector_store %arg7[%c0_25, %c0_26], %44 {strides = array<i32>} : memref<32x1xf32, #tpu.memory_space<vmem>>, vector<32x1xf32>,
      %cst_27 = arith.constant 0.000000e+00 : f32
      %46 = vector.broadcast %cst_27 : f32 to vector<32x1xf32>
      %c0_28 = arith.constant 0 : index
      %c0_29 = arith.constant 0 : index
      %47 = vector.load %arg8[%c0_28, %c0_29] : memref<32x1xf32, #tpu.memory_space<vmem>>, vector<32x1xf32>
      tpu.vector_store %arg8[%c0_28, %c0_29], %46 {strides = array<i32>} : memref<32x1xf32, #tpu.memory_space<vmem>>, vector<32x1xf32>,
    } else {
    }
    %c0 = arith.constant 0 : index
    %c0_1 = arith.constant 0 : index
    %3 = vector.load %arg2[%c0, %c0_1] : memref<32x320xbf16, #tpu.memory_space<vmem>>, vector<32x320xbf16>
    %c0_2 = arith.constant 0 : index
    %c0_3 = arith.constant 0 : index
    %4 = vector.load %arg3[%c0_2, %c0_3] : memref<32x1xi32, #tpu.memory_space<vmem>>, vector<32x1xi32>
    %5 = tpu.iota {dimensions = array<i32: 1>} : vector<32x320xi32>
    %c320_i32 = arith.constant 320 : i32
    %6 = arith.muli %arg1, %c320_i32 : i32
    %7 = vector.broadcast %6 : i32 to vector<32x1xi32>
    %8 = arith.subi %4, %7 : vector<32x1xi32>
    %9 = vector.broadcast %8 : vector<32x1xi32> to vector<32x320xi32>
    %10 = arith.cmpi eq, %5, %9 : vector<32x320xi32>
    %c0_i32_4 = arith.constant 0 : i32
    %11 = arith.sitofp %c0_i32_4 : i32 to bf16
    %12 = vector.broadcast %11 : bf16 to vector<32x320xbf16>
    %13 = arith.select %10, %3, %12 : vector<32x320xi1>, vector<32x320xbf16>
    %14 = arith.extf %13 : vector<32x320xbf16> to vector<32x320xf32>
    %cst = arith.constant dense<0.000000e+00> : vector<32xf32>
    %15 = vector.multi_reduction <add>, %14, %cst [1] : vector<32x320xf32> to vector<32xf32>
    %16 = vector.shape_cast %15 : vector<32xf32> to vector<32x1xf32>
    %17 = arith.truncf %16 : vector<32x1xf32> to vector<32x1xbf16>
    %c0_5 = arith.constant 0 : index
    %c0_6 = arith.constant 0 : index
    %18 = vector.load %arg8[%c0_5, %c0_6] : memref<32x1xf32, #tpu.memory_space<vmem>>, vector<32x1xf32>
    %19 = arith.extf %17 : vector<32x1xbf16> to vector<32x1xf32>
    %20 = arith.addf %18, %19 : vector<32x1xf32>
    %c0_7 = arith.constant 0 : index
    %c0_8 = arith.constant 0 : index
    %21 = vector.load %arg8[%c0_7, %c0_8] : memref<32x1xf32, #tpu.memory_space<vmem>>, vector<32x1xf32>
    tpu.vector_store %arg8[%c0_7, %c0_8], %20 {strides = array<i32>} : memref<32x1xf32, #tpu.memory_space<vmem>>, vector<32x1xf32>,
    %22 = arith.extf %3 : vector<32x320xbf16> to vector<32x320xf32>
    %c0_9 = arith.constant 0 : index
    %c0_10 = arith.constant 0 : index
    %23 = vector.load %arg6[%c0_9, %c0_10] : memref<32x1xf32, #tpu.memory_space<vmem>>, vector<32x1xf32>
    %cst_11 = arith.constant dense<0xFF800000> : vector<32xf32>
    %24 = vector.multi_reduction <maximumf>, %22, %cst_11 [1] : vector<32x320xf32> to vector<32xf32>
    %25 = vector.shape_cast %24 : vector<32xf32> to vector<32x1xf32>
    %26 = arith.maximumf %23, %25 : vector<32x1xf32>
    %27 = arith.subf %23, %26 : vector<32x1xf32>
    %28 = math.exp %27 : vector<32x1xf32>
    %c0_12 = arith.constant 0 : index
    %c0_13 = arith.constant 0 : index
    %29 = vector.load %arg7[%c0_12, %c0_13] : memref<32x1xf32, #tpu.memory_space<vmem>>, vector<32x1xf32>
    %30 = arith.mulf %28, %29 : vector<32x1xf32>
    %31 = vector.broadcast %26 : vector<32x1xf32> to vector<32x320xf32>
    %32 = arith.subf %22, %31 : vector<32x320xf32>
    %33 = math.exp %32 : vector<32x320xf32>
    %cst_14 = arith.constant dense<0.000000e+00> : vector<32xf32>
    %34 = vector.multi_reduction <add>, %33, %cst_14 [1] : vector<32x320xf32> to vector<32xf32>
    %35 = vector.shape_cast %34 : vector<32xf32> to vector<32x1xf32>
    %36 = arith.addf %30, %35 : vector<32x1xf32>
    %c0_15 = arith.constant 0 : index
    %c0_16 = arith.constant 0 : index
    %37 = vector.load %arg7[%c0_15, %c0_16] : memref<32x1xf32, #tpu.memory_space<vmem>>, vector<32x1xf32>
    tpu.vector_store %arg7[%c0_15, %c0_16], %36 {strides = array<i32>} : memref<32x1xf32, #tpu.memory_space<vmem>>, vector<32x1xf32>,
    %c0_17 = arith.constant 0 : index
    %c0_18 = arith.constant 0 : index
    %38 = vector.load %arg6[%c0_17, %c0_18] : memref<32x1xf32, #tpu.memory_space<vmem>>, vector<32x1xf32>
    tpu.vector_store %arg6[%c0_17, %c0_18], %26 {strides = array<i32>} : memref<32x1xf32, #tpu.memory_space<vmem>>, vector<32x1xf32>,
    %c0_i32_19 = arith.constant 0 : i32
    %39 = arith.cmpi eq, %arg1, %c0_i32_19 : i32
    %40 = arith.extui %39 : i1 to i32
    %c0_i32_20 = arith.constant 0 : i32
    %41 = arith.cmpi ne, %40, %c0_i32_20 : i32
    scf.if %41 {
      %c0_21 = arith.constant 0 : index
      %c0_22 = arith.constant 0 : index
      %42 = vector.load %arg6[%c0_21, %c0_22] : memref<32x1xf32, #tpu.memory_space<vmem>>, vector<32x1xf32>
      %c0_23 = arith.constant 0 : index
      %c0_24 = arith.constant 0 : index
      %43 = vector.load %arg7[%c0_23, %c0_24] : memref<32x1xf32, #tpu.memory_space<vmem>>, vector<32x1xf32>
      %44 = math.log %43 : vector<32x1xf32>
      %45 = arith.addf %42, %44 : vector<32x1xf32>
      %c0_i32_25 = arith.constant 0 : i32
      %46 = vector.broadcast %c0_i32_25 : i32 to vector<32x1xi32>
      %47 = arith.cmpi sge, %4, %46 : vector<32x1xi32>
      %c320_i32_26 = arith.constant 320 : i32
      %48 = vector.broadcast %c320_i32_26 : i32 to vector<32x1xi32>
      %49 = arith.cmpi slt, %4, %48 : vector<32x1xi32>
      %50 = arith.andi %47, %49 : vector<32x1xi1>
      %c0_27 = arith.constant 0 : index
      %c0_28 = arith.constant 0 : index
      %51 = vector.load %arg8[%c0_27, %c0_28] : memref<32x1xf32, #tpu.memory_space<vmem>>, vector<32x1xf32>
      %52 = arith.subf %45, %51 : vector<32x1xf32>
      %cst_29 = arith.constant 0.000000e+00 : f32
      %53 = vector.broadcast %cst_29 : f32 to vector<32x1xf32>
      %54 = arith.select %50, %52, %53 : vector<32x1xi1>, vector<32x1xf32>
      %c0_30 = arith.constant 0 : index
      %c0_31 = arith.constant 0 : index
      %55 = vector.load %arg4[%c0_30, %c0_31] : memref<32x1xf32, #tpu.memory_space<vmem>>, vector<32x1xf32>
      tpu.vector_store %arg4[%c0_30, %c0_31], %54 {strides = array<i32>} : memref<32x1xf32, #tpu.memory_space<vmem>>, vector<32x1xf32>,
      %56 = arith.extui %50 : vector<32x1xi1> to vector<32x1xi32>
      %57 = arith.sitofp %56 : vector<32x1xi32> to vector<32x1xf32>
      %c0_32 = arith.constant 0 : index
      %c0_33 = arith.constant 0 : index
      %58 = vector.load %arg5[%c0_32, %c0_33] : memref<32x1xf32, #tpu.memory_space<vmem>>, vector<32x1xf32>
      tpu.vector_store %arg5[%c0_32, %c0_33], %57 {strides = array<i32>} : memref<32x1xf32, #tpu.memory_space<vmem>>, vector<32x1xf32>,
    } else {
    }
    return
  }
  func.func @transform_0(%arg0: i32, %arg1: i32) -> (i32, i32) {
    %c0_i32 = arith.constant 0 : i32
    return %arg0, %arg1 : i32, i32
  }
  func.func @transform_1(%arg0: i32, %arg1: i32) -> (i32, i32) {
    %c0_i32 = arith.constant 0 : i32
    %c0_i32_0 = arith.constant 0 : i32
    return %arg0, %c0_i32 : i32, i32
  }
  func.func @transform_2(%arg0: i32, %arg1: i32) -> (i32, i32) {
    %c0_i32 = arith.constant 0 : i32
    %c0_i32_0 = arith.constant 0 : i32
    return %arg0, %c0_i32 : i32, i32
  }
  func.func @transform_3(%arg0: i32, %arg1: i32) -> (i32, i32) {
    %c0_i32 = arith.constant 0 : i32
    %c0_i32_0 = arith.constant 0 : i32
    return %arg0, %c0_i32 : i32, i32
  }
}

</mosaic_0001>

<llo_original>
// kernel: tpu_custom_call.1
$region0: #{tpu_custom_call.1}
  #allocation0 [shape = 'u32[]', space=smem, size = 0x4, offset = 0x4, fixed_abs, tag = 'smem constant byte address 0x4 - core index']
  #allocation1 [shape = 'u32[72,128]{1,0:T(1,128)}', space=vmem, size = 0x9000, scoped, tag = 'internal scratch']
  #allocation2 [shape = 'f32[32,1]{1,0:T(8,128)}', space=vmem, size = 0x4000, scoped, tag = 'scratch operand']
  #allocation3 [shape = 'f32[32,1]{1,0:T(8,128)}', space=vmem, size = 0x4000, scoped, tag = 'scratch operand']
  #allocation4 [shape = 'f32[32,1]{1,0:T(8,128)}', space=vmem, size = 0x4000, scoped, tag = 'scratch operand']
  %s0 = inlined_call_operand.hbm [shape: bf16[60,320], index: 0, kind: input, shape index: {}]
  %s1 = inlined_call_operand.vmem [shape: s32[64,1], index: 1, kind: input, shape index: {}]
  %s2 = inlined_call_operand.vmem [shape: f32[64,1], index: 2, kind: output, shape index: {0}]
  %s3 = inlined_call_operand.vmem [shape: f32[64,1], index: 3, kind: output, shape index: {1}]
  %4 = xla_tuple %s2, %s3
  %s5 = sld [smem:[#allocation0]]
  $region61: #{tpu_custom_call.1} parent=0
    _
  %s7 = ssub.s32 1, %s5
  %s8 = scalar_select 0, %s7, %s5
  $region1: #{tpu_custom_call.1} parent=0
    #allocation5 [shape = 'u8[49152]{0}', space=vmem, size = 0xc000, scoped, tag = 'input window, operand 0']
    #allocation6 [shape = 's32[2]{0}', space=sflag, size = 0x8, scoped, tag = 'scoped memory for tpu_custom_call.1']
    %9 = vsyncpa [#allocation6], 0
    %s10 = scalar_lea.sflag [#allocation6], 1
    %11 = vsyncpa %s10, 0
    loop: start=0, step=1, limit=4
    $region2: #{tpu_custom_call.1} parent=1 // loop_pre_header
      _
    $region3: #{tpu_custom_call.1} parent=1 // loop_header
      %s13 = sphi 0, %s17
      %p14 = scmp.ge.s32.totalorder %s13, 4
      %s20 = sphi 0, %s32
      %s21 = sphi 0, %s28
      %s22 = sphi 0, %s20
      %s23 = sphi 0, %s21
      %s24 = sphi 0, %s22
      %s25 = sphi 0, %s23
      %s37 = sphi 0, %s39
      %s40 = sphi 0, %s37
      %s41 = sphi 0, %s40
      %s57 = sphi 0, %s41
      %s63 = sphi 0, %s65
      %s66 = sphi 0, %s63
      %s67 = sphi 0, %s66
      %s83 = sphi 0, %s67
      %s89 = sphi 0, %s91
      %s92 = sphi 0, %s89
      %s93 = sphi 0, %s92
      %s109 = sphi 0, %s93
      %s115 = sphi 0, %s117
      %s118 = sphi 0, %s115
      %s119 = sphi 0, %s118
      %s135 = sphi 0, %s119
    $region4: #{tpu_custom_call.1} parent=1 // loop_header_branch
      %16 = sbr.rel (%p14) target = $region8
    $region5: #{tpu_custom_call.1} parent=1 // loop_body
      %s18 = ssub.s32 %s13, 1
      %s19 = ssub.s32 %s13, 2
      %s26 = sadd.s32 1, %s21
      %p27 = scmp.ge.s32.totalorder %s26, 1
      %s28 = scalar_select %p27, 0, %s26
      %s29 = sadd.s32 1, %s20
      %s30 = scalar_select %p27, %s29, %s20
      %p31 = scmp.ge.s32.totalorder %s30, 2
      %s32 = scalar_select %p31, 0, %s30
      %s33 = ssub.s32 %s20, %s32
      %s34 = ssub.s32 %s21, %s28
      %s35 = sor.u32 %s33, %s34
      %p36 = scmp.eq.s32.totalorder %s35, 0
      %s38 = sadd.s32 %s37, 1
      %s39 = scalar_select %p36, %s37, %s38
      %p42 = pneg %p36
      %p43 = scmp.eq.s32.totalorder %s13, 1
      %p44 = por %p42, %p43
      %p45 = scmp.ne.s32.totalorder %s37, %s40
      %p46 = scmp.eq.s32.totalorder %s13, 0
      %p47 = por %p45, %p46
      %p48 = scmp.ne.s32.totalorder %s37, %s40
      %p49 = scmp.eq.s32.totalorder %s18, 1
      %p50 = por %p48, %p49
      %p51 = scmp.ne.s32.totalorder %s40, %s41
      %p52 = scmp.eq.s32.totalorder %s18, 0
      %p53 = por %p51, %p52
      %p54 = scmp.ne.s32.totalorder %s40, %s41
      %p55 = scmp.eq.s32.totalorder %s19, 1
      %p56 = por %p54, %p55
      %p58 = scmp.ne.s32.totalorder %s41, %s57
      %p59 = scmp.eq.s32.totalorder %s19, 0
      %p60 = por %p58, %p59
      %s61 = ssub.s32 %s20, %s32
      %p62 = scmp.eq.s32.totalorder %s61, 0
      %s64 = sadd.s32 %s63, 1
      %s65 = scalar_select %p62, %s63, %s64
      %p68 = pneg %p62
      %p69 = scmp.eq.s32.totalorder %s13, 1
      %p70 = por %p68, %p69
      %p71 = scmp.ne.s32.totalorder %s63, %s66
      %p72 = scmp.eq.s32.totalorder %s13, 0
      %p73 = por %p71, %p72
      %p74 = scmp.ne.s32.totalorder %s63, %s66
      %p75 = scmp.eq.s32.totalorder %s18, 1
      %p76 = por %p74, %p75
      %p77 = scmp.ne.s32.totalorder %s66, %s67
      %p78 = scmp.eq.s32.totalorder %s18, 0
      %p79 = por %p77, %p78
      %p80 = scmp.ne.s32.totalorder %s66, %s67
      %p81 = scmp.eq.s32.totalorder %s19, 1
      %p82 = por %p80, %p81
      %p84 = scmp.ne.s32.totalorder %s67, %s83
      %p85 = scmp.eq.s32.totalorder %s19, 0
      %p86 = por %p84, %p85
      %s87 = ssub.s32 %s20, %s32
      %p88 = scmp.eq.s32.totalorder %s87, 0
      %s90 = sadd.s32 %s89, 1
      %s91 = scalar_select %p88, %s89, %s90
      %p94 = pneg %p88
      %p95 = scmp.eq.s32.totalorder %s13, 1
      %p96 = por %p94, %p95
      %p97 = scmp.ne.s32.totalorder %s89, %s92
      %p98 = scmp.eq.s32.totalorder %s13, 0
      %p99 = por %p97, %p98
      %p100 = scmp.ne.s32.totalorder %s89, %s92
      %p101 = scmp.eq.s32.totalorder %s18, 1
      %p102 = por %p100, %p101
      %p103 = scmp.ne.s32.totalorder %s92, %s93
      %p104 = scmp.eq.s32.totalorder %s18, 0
      %p105 = por %p103, %p104
      %p106 = scmp.ne.s32.totalorder %s92, %s93
      %p107 = scmp.eq.s32.totalorder %s19, 1
      %p108 = por %p106, %p107
      %p110 = scmp.ne.s32.totalorder %s93, %s109
      %p111 = scmp.eq.s32.totalorder %s19, 0
      %p112 = por %p110, %p111
      %s113 = ssub.s32 %s20, %s32
      %p114 = scmp.eq.s32.totalorder %s113, 0
      %s116 = sadd.s32 %s115, 1
      %s117 = scalar_select %p114, %s115, %s116
      %p120 = pneg %p114
      %p121 = scmp.eq.s32.totalorder %s13, 1
      %p122 = por %p120, %p121
      %p123 = scmp.ne.s32.totalorder %s115, %s118
      %p124 = scmp.eq.s32.totalorder %s13, 0
      %p125 = por %p123, %p124
      %p126 = scmp.ne.s32.totalorder %s115, %s118
      %p127 = scmp.eq.s32.totalorder %s18, 1
      %p128 = por %p126, %p127
      %p129 = scmp.ne.s32.totalorder %s118, %s119
      %p130 = scmp.eq.s32.totalorder %s18, 0
      %p131 = por %p129, %p130
      %p132 = scmp.ne.s32.totalorder %s118, %s119
      %p133 = scmp.eq.s32.totalorder %s19, 1
      %p134 = por %p132, %p133
      %p136 = scmp.ne.s32.totalorder %s119, %s135
      %p137 = scmp.eq.s32.totalorder %s19, 0
      %p138 = por %p136, %p137
      %p139 = scmp.le.s32.totalorder 1, %s13
      %p140 = scmp.lt.s32.totalorder %s13, 3
      %p141 = pnand %p139, %p140
      %p142 = pneg %p141
      // Predicated region
      $region9: #{tpu_custom_call.1} parent=5 // pred_check
        _
      $region10: #{tpu_custom_call.1} parent=5 // pred_check_branch
        %144 = sbr.rel (%p141) target = $region12
      $region11: #{tpu_custom_call.1} parent=5 // pred_region
        %s145 = ssub.s32 %s13, 1
      $region12: #{tpu_custom_call.1} parent=5 // pred_fallthru
        _
      %p146 = scmp.lt.s32.totalorder %s13, 2
      // Predicated region
      $region13: #{tpu_custom_call.1} parent=5 // pred_check
        %p147 = pneg %p146
      $region14: #{tpu_custom_call.1} parent=5 // pred_check_branch
        %149 = sbr.rel (%p147) target = $region16
      $region15: #{tpu_custom_call.1} parent=5 // pred_region
        // Predicated region
        $region17: #{tpu_custom_call.1} parent=15 // pred_check
          %p150 = pneg %p47
        $region18: #{tpu_custom_call.1} parent=15 // pred_check_branch
          %152 = sbr.rel (%p150) target = $region20
        $region19: #{tpu_custom_call.1} parent=15 // pred_region
          %s153 = sand.u32 %s37, 1
          %s154 = scalar_lea.sflag [#allocation6], %s153
          %s155 = sand.u32 %s37, 1
          %s156 = smul.addr %s155, 48
          %s157 = scalar_lea.vmem [#allocation5], %s156
          %s158 = smul.u32 4, %s20
          %s159 = smul.u32 3, %s21
          %161 = vsyncadd %s154, 0
          %s162 = smul.addr %s158, 3
          %s163 = sadd.s32 %s159, %s162
          %s164 = smul.addr %s163, 4
          %s165 = scalar_lea.hbm %s0, %s164
          %s166 = sshll.u32 %s165, 4
          %s167 = int_to_ptr.hbm [resolvable:$true] %s166
          %s168 = sshll.u32 %s157, 4
          %s169 = int_to_ptr.vmem [resolvable:$true] %s168
          %174 = dma.hbm_to_vmem [thread:$0]  %s167, 768, %s169, %s154, 192, 192, 12
        $region20: #{tpu_custom_call.1} parent=15 // pred_fallthru
          _
        // Predicated region
        $region21: #{tpu_custom_call.1} parent=15 // pred_check
          %p175 = pneg %p73
        $region22: #{tpu_custom_call.1} parent=15 // pred_check_branch
          %177 = sbr.rel (%p175) target = $region24
        $region23: #{tpu_custom_call.1} parent=15 // pred_region
          %s178 = smul.u32 4, %s20
          %p179 = scmp.lt.s32.totalorder %s178, 7
          %s180 = scalar_select %p179, %s178, 7
          %s181 = smul.addr %s180, 8
          %s182 = scalar_lea.vmem %s1, %s181
          %s183 = smul.u32 4, %s20
        $region24: #{tpu_custom_call.1} parent=15 // pred_fallthru
          _
      $region16: #{tpu_custom_call.1} parent=5 // pred_fallthru
        _
      %p184 = scmp.le.s32.totalorder 1, %s13
      %p185 = scmp.lt.s32.totalorder %s13, 3
      %p186 = pnand %p184, %p185
      %p187 = pneg %p186
      // Predicated region
      $region25: #{tpu_custom_call.1} parent=5 // pred_check
        _
      $region26: #{tpu_custom_call.1} parent=5 // pred_check_branch
        %189 = sbr.rel (%p186) target = $region28
      $region27: #{tpu_custom_call.1} parent=5 // pred_region
        %s190 = ssub.s32 %s13, 1
        %s191 = sand.u32 %s40, 1
        %s192 = scalar_lea.sflag [#allocation6], %s191
        %s193 = sand.u32 %s40, 1
        %s194 = smul.addr %s193, 48
        %s195 = scalar_lea.vmem [#allocation5], %s194
        // Predicated region
        $region29: #{tpu_custom_call.1} parent=27 // pred_check
          %p196 = pneg %p53
        $region30: #{tpu_custom_call.1} parent=27 // pred_check_branch
          %198 = sbr.rel (%p196) target = $region32
        $region31: #{tpu_custom_call.1} parent=27 // pred_region
          %200 = dma.done %s192, 768
        $region32: #{tpu_custom_call.1} parent=27 // pred_fallthru
          _
        %s201 = sand.u32 %s40, 1
        %s202 = scalar_lea.sflag [#allocation6], %s201
        %s203 = sand.u32 %s40, 1
        %s204 = smul.addr %s203, 48
        %s205 = scalar_lea.vmem [#allocation5], %s204
        %p206 = pneg %p53
        %p207 = pneg %p50
        %s208 = smul.u32 4, %s22
        %p209 = scmp.lt.s32.totalorder %s208, 7
        %s210 = scalar_select %p209, %s208, 7
        %s211 = smul.addr %s210, 8
        %s212 = scalar_lea.vmem %s1, %s211
        %p213 = pneg %p79
        %p214 = pneg %p76
        %p215 = pneg %p105
        %p216 = pneg %p102
        %s217 = smul.u32 4, %s22
        %p218 = scmp.lt.s32.totalorder %s217, 7
        %s219 = scalar_select %p218, %s217, 7
        %s220 = smul.addr %s219, 8
        %s221 = scalar_lea.vmem %s2, %s220
        %p222 = pneg %p131
        %p223 = pneg %p128
        %s224 = smul.u32 4, %s22
        %p225 = scmp.lt.s32.totalorder %s224, 7
        %s226 = scalar_select %p225, %s224, 7
        %s227 = smul.addr %s226, 8
        %s228 = scalar_lea.vmem %s3, %s227
        %s229 = smul.u32 4, %s22
        %s230 = smul.u32 3, %s23
        %s231 = smul.u32 4, %s22
        %p232 = scmp.lt.s32.totalorder %s231, 7
        %s233 = scalar_select %p232, %s231, 7
        %s234 = smul.addr %s233, 8
        %s235 = scalar_lea.vmem %s1, %s234
        %s236 = smul.u32 4, %s22
        %s237 = smul.u32 4, %s22
        %p238 = scmp.lt.s32.totalorder %s237, 7
        %s239 = scalar_select %p238, %s237, 7
        %s240 = smul.addr %s239, 8
        %s241 = scalar_lea.vmem %s2, %s240
        %s242 = smul.u32 4, %s22
        %s243 = smul.u32 4, %s22
        %p244 = scmp.lt.s32.totalorder %s243, 7
        %s245 = scalar_select %p244, %s243, 7
        %s246 = smul.addr %s245, 8
        %s247 = scalar_lea.vmem %s3, %s246
        %s248 = smul.u32 4, %s22
        %p250 = scmp.eq.s32.totalorder %s23, 0
        // Predicated region
        $region33: #{tpu_custom_call.1} parent=27 // pred_check
          %p251 = pneg %p250
        $region34: #{tpu_custom_call.1} parent=27 // pred_check_branch
          %253 = sbr.rel (%p251) target = $region36
        $region35: #{tpu_custom_call.1} parent=27 // pred_region
          %vm254 = vcmask 7168
          %255 = vst.msk [vmem:[#allocation2] sm:$0xff] %vm254, -inf
          %256 = vst.msk [vmem:[#allocation2 + $0x8] sm:$0xff] %vm254, -inf
          %257 = vst.msk [vmem:[#allocation2 + $0x10] sm:$0xff] %vm254, -inf
          %258 = vst.msk [vmem:[#allocation2 + $0x18] sm:$0xff] %vm254, -inf
          %259 = vst.msk [vmem:[#allocation3] sm:$0xff] %vm254, 0.0
          %260 = vst.msk [vmem:[#allocation3 + $0x8] sm:$0xff] %vm254, 0.0
          %261 = vst.msk [vmem:[#allocation3 + $0x10] sm:$0xff] %vm254, 0.0
          %262 = vst.msk [vmem:[#allocation3 + $0x18] sm:$0xff] %vm254, 0.0
          %263 = vst.msk [vmem:[#allocation4] sm:$0xff] %vm254, 0.0
          %264 = vst.msk [vmem:[#allocation4 + $0x8] sm:$0xff] %vm254, 0.0
          %265 = vst.msk [vmem:[#allocation4 + $0x10] sm:$0xff] %vm254, 0.0
          %266 = vst.msk [vmem:[#allocation4 + $0x18] sm:$0xff] %vm254, 0.0
        $region36: #{tpu_custom_call.1} parent=27 // pred_fallthru
          _
        %v267 = vld [vmem:[%s195] sm:$0xff]
        %v268 = vld [vmem:[%s195 + $0x8] sm:$0xf]
        %v269 = vld [vmem:[%s195 + $0xc] sm:$0xff]
        %v270 = vld [vmem:[%s195 + $0x14] sm:$0xf]
        %v271 = vld [vmem:[%s195 + $0x18] sm:$0xff]
        %v272 = vld [vmem:[%s195 + $0x20] sm:$0xf]
        %v273 = vld [vmem:[%s195 + $0x24] sm:$0xff]
        %v274 = vld [vmem:[%s195 + $0x2c] sm:$0xf]
        %v275 = vld [vmem:[%s235] sm:$0xff]
        %v276 = vld [vmem:[%s235 + $0x8] sm:$0xff]
        %v277 = vld [vmem:[%s235 + $0x10] sm:$0xff]
        %v278 = vld [vmem:[%s235 + $0x18] sm:$0xff]
        %v279 = vlaneseq
        %v280 = vand.u32 %v279, 127
        %v281 = vadd.s32 %v280, 128
        %v282 = vadd.s32 %v280, 256
        %s283 = smul.u32 %s23, 320
        %v284 = vstv %s283
        %v285 = vsub.s32 %v275, %v284
        %v286 = vsub.s32 %v276, %v284
        %v287 = vsub.s32 %v277, %v284
        %v288 = vsub.s32 %v278, %v284
        %289 = vset.pattern.permute.xlu0 0
        %290 = vperm.xlu0 %289, %v285
        %v291 = vpop.permute.xlu0 %290
        %292 = vset.pattern.permute.xlu0 0
        %293 = vperm.xlu0 %292, %v286
        %v294 = vpop.permute.xlu0 %293
        %295 = vset.pattern.permute.xlu0 0
        %296 = vperm.xlu0 %295, %v287
        %v297 = vpop.permute.xlu0 %296
        %298 = vset.pattern.permute.xlu0 0
        %299 = vperm.xlu0 %298, %v288
        %v300 = vpop.permute.xlu0 %299
        %vm301 = vcmp.eq.s32.totalorder %v280, %v291
        %vm302 = vcmp.eq.s32.totalorder %v281, %v291
        %vm303 = vcmp.eq.s32.totalorder %v282, %v291
        %vm304 = vcmp.eq.s32.totalorder %v280, %v294
        %vm305 = vcmp.eq.s32.totalorder %v281, %v294
        %vm306 = vcmp.eq.s32.totalorder %v282, %v294
        %vm307 = vcmp.eq.s32.totalorder %v280, %v297
        %vm308 = vcmp.eq.s32.totalorder %v281, %v297
        %vm309 = vcmp.eq.s32.totalorder %v282, %v297
        %vm310 = vcmp.eq.s32.totalorder %v280, %v300
        %vm311 = vcmp.eq.s32.totalorder %v281, %v300
        %vm312 = vcmp.eq.s32.totalorder %v282, %v300
        %vm313 = vmpackc.low %vm302, %vm301
        %vm314 = vmpackc.low %vm303, %vm303
        %vm315 = vmpackc.low %vm305, %vm304
        %vm316 = vmpackc.low %vm306, %vm306
        %vm317 = vmpackc.low %vm308, %vm307
        %vm318 = vmpackc.low %vm309, %vm309
        %vm319 = vmpackc.low %vm311, %vm310
        %vm320 = vmpackc.low %vm312, %vm312
        %v321 = vsel %vm313, %v267, 0
        %v322 = vsel %vm314, %v268, 0
        %v323 = vsel %vm315, %v269, 0
        %v324 = vsel %vm316, %v270, 0
        %v325 = vsel %vm317, %v271, 0
        %v326 = vsel %vm318, %v272, 0
        %v327 = vsel %vm319, %v273, 0
        %v328 = vsel %vm320, %v274, 0
        %v329 = vunpack.c.l.bf16 %v321
        %v330 = vunpack.c.h.bf16 %v321
        %v331 = vunpack.c.l.bf16 %v322
        %v332 = vunpack.c.l.bf16 %v323
        %v333 = vunpack.c.h.bf16 %v323
        %v334 = vunpack.c.l.bf16 %v324
        %v335 = vunpack.c.l.bf16 %v325
        %v336 = vunpack.c.h.bf16 %v325
        %v337 = vunpack.c.l.bf16 %v326
        %v338 = vunpack.c.l.bf16 %v327
        %v339 = vunpack.c.h.bf16 %v327
        %v340 = vunpack.c.l.bf16 %v328
        %v341 = vadd.f32 %v329, %v330
        %vm342 = vcmask 523264
        %v343 = vsel %vm342, %v331, 0.0
        %v344 = vadd.f32 %v341, %v343
        %345 = vadd.xlane.f32.xlu0 %v344
        %v346 = vpop.xlane.xlu0 %345
        %v347 = vadd.f32 %v332, %v333
        %v348 = vsel %vm342, %v334, 0.0
        %v349 = vadd.f32 %v347, %v348
        %350 = vadd.xlane.f32.xlu0 %v349
        %v351 = vpop.xlane.xlu0 %350
        %v352 = vadd.f32 %v335, %v336
        %v353 = vsel %vm342, %v337, 0.0
        %v354 = vadd.f32 %v352, %v353
        %355 = vadd.xlane.f32.xlu0 %v354
        %v356 = vpop.xlane.xlu0 %355
        %v357 = vadd.f32 %v338, %v339
        %v358 = vsel %vm342, %v340, 0.0
        %v359 = vadd.f32 %v357, %v358
        %360 = vadd.xlane.f32.xlu0 %v359
        %v361 = vpop.xlane.xlu0 %360
        %v362 = vpack.c.bf16 %v346, %v346
        %v363 = vpack.c.bf16 %v351, %v351
        %v364 = vpack.c.bf16 %v356, %v356
        %v365 = vpack.c.bf16 %v361, %v361
        %v366 = vld [vmem:[#allocation4] sm:$0xff]
        %v367 = vld [vmem:[#allocation4 + $0x8] sm:$0xff]
        %v368 = vld [vmem:[#allocation4 + $0x10] sm:$0xff]
        %v369 = vld [vmem:[#allocation4 + $0x18] sm:$0xff]
        %v370 = vunpack.c.l.bf16 %v362
        %v371 = vunpack.c.l.bf16 %v363
        %v372 = vunpack.c.l.bf16 %v364
        %v373 = vunpack.c.l.bf16 %v365
        %v374 = vadd.f32 %v366, %v370
        %v375 = vadd.f32 %v367, %v371
        %v376 = vadd.f32 %v368, %v372
        %v377 = vadd.f32 %v369, %v373
        %vm378 = vcmask 7168
        %379 = vst.msk [vmem:[#allocation4] sm:$0xff] %vm378, %v374
        %380 = vst.msk [vmem:[#allocation4 + $0x8] sm:$0xff] %vm378, %v375
        %381 = vst.msk [vmem:[#allocation4 + $0x10] sm:$0xff] %vm378, %v376
        %382 = vst.msk [vmem:[#allocation4 + $0x18] sm:$0xff] %vm378, %v377
        %v383 = vunpack.c.l.bf16 %v267
        %v384 = vunpack.c.h.bf16 %v267
        %v385 = vunpack.c.l.bf16 %v268
        %v386 = vunpack.c.l.bf16 %v269
        %v387 = vunpack.c.h.bf16 %v269
        %v388 = vunpack.c.l.bf16 %v270
        %v389 = vunpack.c.l.bf16 %v271
        %v390 = vunpack.c.h.bf16 %v271
        %v391 = vunpack.c.l.bf16 %v272
        %v392 = vunpack.c.l.bf16 %v273
        %v393 = vunpack.c.h.bf16 %v273
        %v394 = vunpack.c.l.bf16 %v274
        %v395 = vld [vmem:[#allocation2] sm:$0xff]
        %v396 = vld [vmem:[#allocation2 + $0x8] sm:$0xff]
        %v397 = vld [vmem:[#allocation2 + $0x10] sm:$0xff]
        %v398 = vld [vmem:[#allocation2 + $0x18] sm:$0xff]
        %v399 = vmax.f32 %v383, %v384
        %v400 = vsel %vm342, %v385, -inf
        %v401 = vmax.f32 %v399, %v400
        %402 = vmax.xlane.f32.xlu0 %v401
        %v403 = vpop.xlane.xlu0 %402
        %v404 = vmax.f32 %v386, %v387
        %v405 = vsel %vm342, %v388, -inf
        %v406 = vmax.f32 %v404, %v405
        %407 = vmax.xlane.f32.xlu0 %v406
        %v408 = vpop.xlane.xlu0 %407
        %v409 = vmax.f32 %v389, %v390
        %v410 = vsel %vm342, %v391, -inf
        %v411 = vmax.f32 %v409, %v410
        %412 = vmax.xlane.f32.xlu0 %v411
        %v413 = vpop.xlane.xlu0 %412
        %v414 = vmax.f32 %v392, %v393
        %v415 = vsel %vm342, %v394, -inf
        %v416 = vmax.f32 %v414, %v415
        %417 = vmax.xlane.f32.xlu0 %v416
        %v418 = vpop.xlane.xlu0 %417
        %v419 = vmax.f32 %v395, %v403
        %v420 = vmax.f32 %v396, %v408
        %v421 = vmax.f32 %v397, %v413
        %v422 = vmax.f32 %v398, %v418
        %v423 = vsub.f32 %v395, %v419
        %v424 = vsub.f32 %v396, %v420
        %v425 = vsub.f32 %v397, %v421
        %v426 = vsub.f32 %v398, %v422
        %v427 = vmul.f32 %v423, 1.442695
        %v428 = vpow.pop %v427
        %v429 = vmul.f32 %v424, 1.442695
        %v430 = vpow.pop %v429
        %v431 = vmul.f32 %v425, 1.442695
        %v432 = vpow.pop %v431
        %v433 = vmul.f32 %v426, 1.442695
        %v434 = vpow.pop %v433
        %v435 = vld [vmem:[#allocation3] sm:$0xff]
        %v436 = vld [vmem:[#allocation3 + $0x8] sm:$0xff]
        %v437 = vld [vmem:[#allocation3 + $0x10] sm:$0xff]
        %v438 = vld [vmem:[#allocation3 + $0x18] sm:$0xff]
        %v439 = vmul.f32 %v428, %v435
        %v440 = vmul.f32 %v430, %v436
        %v441 = vmul.f32 %v432, %v437
        %v442 = vmul.f32 %v434, %v438
        %444 = vset.pattern.permute.xlu0 0
        %445 = vperm.xlu0 %444, %v419
        %v446 = vpop.permute.xlu0 %445
        %449 = vset.pattern.permute.xlu0 0
        %450 = vperm.xlu0 %449, %v420
        %v451 = vpop.permute.xlu0 %450
        %454 = vset.pattern.permute.xlu0 0
        %455 = vperm.xlu0 %454, %v421
        %v456 = vpop.permute.xlu0 %455
        %459 = vset.pattern.permute.xlu0 0
        %460 = vperm.xlu0 %459, %v422
        %v461 = vpop.permute.xlu0 %460
        %v463 = vsub.f32 %v383, %v446
        %v464 = vsub.f32 %v384, %v446
        %v465 = vsub.f32 %v385, %v446
        %v466 = vsub.f32 %v386, %v451
        %v467 = vsub.f32 %v387, %v451
        %v468 = vsub.f32 %v388, %v451
        %v469 = vsub.f32 %v389, %v456
        %v470 = vsub.f32 %v390, %v456
        %v471 = vsub.f32 %v391, %v456
        %v472 = vsub.f32 %v392, %v461
        %v473 = vsub.f32 %v393, %v461
        %v474 = vsub.f32 %v394, %v461
        %v475 = vmul.f32 %v463, 1.442695
        %v476 = vpow.pop %v475
        %v477 = vmul.f32 %v464, 1.442695
        %v478 = vpow.pop %v477
        %v479 = vmul.f32 %v465, 1.442695
        %v480 = vpow.pop %v479
        %v481 = vmul.f32 %v466, 1.442695
        %v482 = vpow.pop %v481
        %v483 = vmul.f32 %v467, 1.442695
        %v484 = vpow.pop %v483
        %v485 = vmul.f32 %v468, 1.442695
        %v486 = vpow.pop %v485
        %v487 = vmul.f32 %v469, 1.442695
        %v488 = vpow.pop %v487
        %v489 = vmul.f32 %v470, 1.442695
        %v490 = vpow.pop %v489
        %v491 = vmul.f32 %v471, 1.442695
        %v492 = vpow.pop %v491
        %v493 = vmul.f32 %v472, 1.442695
        %v494 = vpow.pop %v493
        %v495 = vmul.f32 %v473, 1.442695
        %v496 = vpow.pop %v495
        %v497 = vmul.f32 %v474, 1.442695
        %v498 = vpow.pop %v497
        %v499 = vadd.f32 %v476, %v478
        %v500 = vsel %vm342, %v480, 0.0
        %v501 = vadd.f32 %v499, %v500
        %502 = vadd.xlane.f32.xlu0 %v501
        %v503 = vpop.xlane.xlu0 %502
        %v504 = vadd.f32 %v482, %v484
        %v505 = vsel %vm342, %v486, 0.0
        %v506 = vadd.f32 %v504, %v505
        %507 = vadd.xlane.f32.xlu0 %v506
        %v508 = vpop.xlane.xlu0 %507
        %v509 = vadd.f32 %v488, %v490
        %v510 = vsel %vm342, %v492, 0.0
        %v511 = vadd.f32 %v509, %v510
        %512 = vadd.xlane.f32.xlu0 %v511
        %v513 = vpop.xlane.xlu0 %512
        %v514 = vadd.f32 %v494, %v496
        %v515 = vsel %vm342, %v498, 0.0
        %v516 = vadd.f32 %v514, %v515
        %517 = vadd.xlane.f32.xlu0 %v516
        %v518 = vpop.xlane.xlu0 %517
        %v519 = vadd.f32 %v439, %v503
        %v520 = vadd.f32 %v440, %v508
        %v521 = vadd.f32 %v441, %v513
        %v522 = vadd.f32 %v442, %v518
        %523 = vst.msk [vmem:[#allocation3] sm:$0xff] %vm378, %v519
        %524 = vst.msk [vmem:[#allocation3 + $0x8] sm:$0xff] %vm378, %v520
        %525 = vst.msk [vmem:[#allocation3 + $0x10] sm:$0xff] %vm378, %v521
        %526 = vst.msk [vmem:[#allocation3 + $0x18] sm:$0xff] %vm378, %v522
        %527 = vst.msk [vmem:[#allocation2] sm:$0xff] %vm378, %v419
        %528 = vst.msk [vmem:[#allocation2 + $0x8] sm:$0xff] %vm378, %v420
        %529 = vst.msk [vmem:[#allocation2 + $0x10] sm:$0xff] %vm378, %v421
        %530 = vst.msk [vmem:[#allocation2 + $0x18] sm:$0xff] %vm378, %v422
        // Predicated region
        $region37: #{tpu_custom_call.1} parent=27 // pred_check
          %p531 = pneg %p250
        $region38: #{tpu_custom_call.1} parent=27 // pred_check_branch
          %533 = sbr.rel (%p531) target = $region40
        $region39: #{tpu_custom_call.1} parent=27 // pred_region
          %v534 = vld [vmem:[#allocation2] sm:$0xff]
          %v535 = vld [vmem:[#allocation2 + $0x8] sm:$0xff]
          %v536 = vld [vmem:[#allocation2 + $0x10] sm:$0xff]
          %v537 = vld [vmem:[#allocation2 + $0x18] sm:$0xff]
          %v538 = vld [vmem:[#allocation3] sm:$0xff]
          %v539 = vld [vmem:[#allocation3 + $0x8] sm:$0xff]
          %v540 = vld [vmem:[#allocation3 + $0x10] sm:$0xff]
          %v541 = vld [vmem:[#allocation3 + $0x18] sm:$0xff]
          %v542 = vlog2.pop %v538
          %v543 = vmul.f32 %v542, 0.6931472
          %v544 = vlog2.pop %v539
          %v545 = vmul.f32 %v544, 0.6931472
          %v546 = vlog2.pop %v540
          %v547 = vmul.f32 %v546, 0.6931472
          %v548 = vlog2.pop %v541
          %v549 = vmul.f32 %v548, 0.6931472
          %v550 = vadd.f32 %v534, %v543
          %v551 = vadd.f32 %v535, %v545
          %v552 = vadd.f32 %v536, %v547
          %v553 = vadd.f32 %v537, %v549
          %vm554 = vcmp.ge.s32.totalorder %v275, 0
          %vm555 = vcmp.ge.s32.totalorder %v276, 0
          %vm556 = vcmp.ge.s32.totalorder %v277, 0
          %vm557 = vcmp.ge.s32.totalorder %v278, 0
          %vm558 = vcmp.lt.s32.totalorder %v275, 320
          %vm559 = vcmp.lt.s32.totalorder %v276, 320
          %vm560 = vcmp.lt.s32.totalorder %v277, 320
          %vm561 = vcmp.lt.s32.totalorder %v278, 320
          %vm562 = vmand %vm554, %vm558
          %vm563 = vmand %vm555, %vm559
          %vm564 = vmand %vm556, %vm560
          %vm565 = vmand %vm557, %vm561
          %v566 = vld [vmem:[#allocation4] sm:$0xff]
          %v567 = vld [vmem:[#allocation4 + $0x8] sm:$0xff]
          %v568 = vld [vmem:[#allocation4 + $0x10] sm:$0xff]
          %v569 = vld [vmem:[#allocation4 + $0x18] sm:$0xff]
          %v570 = vsub.f32 %v550, %v566
          %v571 = vsub.f32 %v551, %v567
          %v572 = vsub.f32 %v552, %v568
          %v573 = vsub.f32 %v553, %v569
          %v574 = vsel %vm562, %v570, 0.0
          %v575 = vsel %vm563, %v571, 0.0
          %v576 = vsel %vm564, %v572, 0.0
          %v577 = vsel %vm565, %v573, 0.0
          %578 = vst.msk [vmem:[%s241] sm:$0xff] %vm378, %v574
          %579 = vst.msk [vmem:[%s241 + $0x8] sm:$0xff] %vm378, %v575
          %580 = vst.msk [vmem:[%s241 + $0x10] sm:$0xff] %vm378, %v576
          %581 = vst.msk [vmem:[%s241 + $0x18] sm:$0xff] %vm378, %v577
          %v582 = vsel %vm562, 1, 0
          %v583 = vsel %vm563, 1, 0
          %v584 = vsel %vm564, 1, 0
          %v585 = vsel %vm565, 1, 0
          %v586 = vcvt.s32.f32 %v582
          %v587 = vcvt.s32.f32 %v583
          %v588 = vcvt.s32.f32 %v584
          %v589 = vcvt.s32.f32 %v585
          %590 = vst.msk [vmem:[%s247] sm:$0xff] %vm378, %v586
          %591 = vst.msk [vmem:[%s247 + $0x8] sm:$0xff] %vm378, %v587
          %592 = vst.msk [vmem:[%s247 + $0x10] sm:$0xff] %vm378, %v588
          %593 = vst.msk [vmem:[%s247 + $0x18] sm:$0xff] %vm378, %v589
        $region40: #{tpu_custom_call.1} parent=27 // pred_fallthru
          _
        %s594 = smul.u32 4, %s22
        %p595 = scmp.lt.s32.totalorder %s594, 7
        %s596 = scalar_select %p595, %s594, 7
        %s597 = smul.addr %s596, 8
        %s598 = scalar_lea.vmem %s2, %s597
        %s599 = smul.u32 4, %s22
        %p600 = scmp.lt.s32.totalorder %s599, 7
        %s601 = scalar_select %p600, %s599, 7
        %s602 = smul.addr %s601, 8
        %s603 = scalar_lea.vmem %s3, %s602
        // Predicated region
        $region41: #{tpu_custom_call.1} parent=27 // pred_check
          %p604 = pneg %p102
        $region42: #{tpu_custom_call.1} parent=27 // pred_check_branch
          %606 = sbr.rel (%p604) target = $region44
        $region43: #{tpu_custom_call.1} parent=27 // pred_region
          %s607 = smul.u32 4, %s22
        $region44: #{tpu_custom_call.1} parent=27 // pred_fallthru
          _
        // Predicated region
        $region45: #{tpu_custom_call.1} parent=27 // pred_check
          %p608 = pneg %p128
        $region46: #{tpu_custom_call.1} parent=27 // pred_check_branch
          %610 = sbr.rel (%p608) target = $region48
        $region47: #{tpu_custom_call.1} parent=27 // pred_region
          %s611 = smul.u32 4, %s22
        $region48: #{tpu_custom_call.1} parent=27 // pred_fallthru
          _
      $region28: #{tpu_custom_call.1} parent=5 // pred_fallthru
        _
      %p612 = scmp.le.s32.totalorder 2, %s13
      // Predicated region
      $region49: #{tpu_custom_call.1} parent=5 // pred_check
        %p613 = pneg %p612
      $region50: #{tpu_custom_call.1} parent=5 // pred_check_branch
        %615 = sbr.rel (%p613) target = $region52
      $region51: #{tpu_custom_call.1} parent=5 // pred_region
        %s616 = ssub.s32 %s13, 2
        // Predicated region
        $region53: #{tpu_custom_call.1} parent=51 // pred_check
          %p617 = pneg %p108
        $region54: #{tpu_custom_call.1} parent=51 // pred_check_branch
          %619 = sbr.rel (%p617) target = $region56
        $region55: #{tpu_custom_call.1} parent=51 // pred_region
          %s620 = smul.u32 4, %s24
          %p621 = scmp.lt.s32.totalorder %s620, 7
          %s622 = scalar_select %p621, %s620, 7
          %s623 = smul.addr %s622, 8
          %s624 = scalar_lea.vmem %s2, %s623
        $region56: #{tpu_custom_call.1} parent=51 // pred_fallthru
          _
        // Predicated region
        $region57: #{tpu_custom_call.1} parent=51 // pred_check
          %p625 = pneg %p134
        $region58: #{tpu_custom_call.1} parent=51 // pred_check_branch
          %627 = sbr.rel (%p625) target = $region60
        $region59: #{tpu_custom_call.1} parent=51 // pred_region
          %s628 = smul.u32 4, %s24
          %p629 = scmp.lt.s32.totalorder %s628, 7
          %s630 = scalar_select %p629, %s628, 7
          %s631 = smul.addr %s630, 8
          %s632 = scalar_lea.vmem %s3, %s631
        $region60: #{tpu_custom_call.1} parent=51 // pred_fallthru
          _
      $region52: #{tpu_custom_call.1} parent=5 // pred_fallthru
        _
    $region6: #{tpu_custom_call.1} parent=1 // loop_footer
      %s17 = sadd.s32 1, %s13
    $region7: #{tpu_custom_call.1} parent=1 // loop_footer_branch
      %12 = sbr.rel target = $region3
    $region8: #{tpu_custom_call.1} parent=1 // loop_exit
      _
    %633 = vsyncpa [#allocation6], 1
    %s634 = scalar_lea.sflag [#allocation6], 1
    %635 = vsyncpa %s634, 1

</llo_original>
